<compile_context>
chip_gen: v7x
topology: tpu7x:2x2x1
jax: 0.10.0
libtpu: 0.0.40
codegen_flags: <defaults>
</compile_context>

<pallas_src>
import functools
import math

import jax
import jax.numpy as jnp
from jax import lax
from jax.experimental import pallas as pl
from jax.experimental.pallas import tpu as pltpu

GAMMA = 1.5
ALPHA = 0.25


def _qfocal_kernel(pred_ref, true_ref, out_ref, acc_ref, *,
                   rows, row_block, blocks_per_core, n_full,
                   inv_total, gamma, alpha, approx_recip):
    c = pl.program_id(0)            # core axis (CORE_PARALLEL on v7x, size 1 otherwise)
    i = pl.program_id(1)            # reduction axis (last, "arbitrary")
    g = c * blocks_per_core + i     # intended (unclamped) global row-block index

    @pl.when(i == 0)
    def _():
        acc_ref[...] = jnp.zeros_like(acc_ref)

    x = pred_ref[...].astype(jnp.float32)
    y = true_ref[...].astype(jnp.float32)

    # Shared exp(-|x|): used by both the stable BCE term and the sigmoid.
    e = jnp.exp(-jnp.abs(x))
    bce = jnp.maximum(x, 0.0) - x * y + jnp.log1p(e)

    # sigmoid(x) reconstructed from e (no second exp):
    #   x >= 0: 1/(1+e)        x < 0: e/(1+e)
    one_pe = 1.0 + e
    if approx_recip:
        inv_1pe = pl.reciprocal(one_pe, approx=True)   # EUP vrcp (v7x path)
    else:
        inv_1pe = 1.0 / one_pe
    p = jnp.where(x >= 0.0, inv_1pe, e * inv_1pe)

    # Single-FMA form of y*alpha + (1-y)*(1-alpha).
    alpha_factor = (1.0 - alpha) + y * (2.0 * alpha - 1.0)

    d = jnp.abs(y - p)
    if gamma == 1.5:
        mod = d * jnp.sqrt(d)       # d ** 1.5, exact and safe at d == 0
    else:
        mod = jnp.where(d > 0.0,
                        jnp.exp(gamma * jnp.log(jnp.where(d > 0.0, d, 1.0))),
                        0.0)

    term = bce * alpha_factor * mod

    # Full blocks: pure VPU add into the f32 accumulator (no mask, no reduce).
    @pl.when(g < n_full)
    def _():
        acc_ref[...] += term

    # Ragged / out-of-range blocks: mask rows past the real row count.  Garbage
    # (even NaN) in the padded DMA region is discarded by the select.
    @pl.when(g >= n_full)
    def _():
        row_ids = g * row_block + lax.broadcasted_iota(jnp.int32, term.shape, 0)
        acc_ref[...] += jnp.where(row_ids < rows, term, 0.0)

    @pl.when(i == pl.num_programs(1) - 1)
    def _():
        partial_mean = jnp.sum(acc_ref[...]) * inv_total
        out_ref[...] = jnp.broadcast_to(partial_mean, out_ref.shape)


def _tpu_generation():
    """Best-effort chip-generation sniff (0 if unknown)."""
    try:
        kind = jax.devices()[0].device_kind.lower()
    except Exception:
        return 0
    for g in (7, 6, 5, 4):
        if f"v{g}" in kind or f"tpu{g}" in kind:
            return g
    return 0


def qfocal_loss(pred, true, *, gamma=GAMMA, alpha=ALPHA,
                lane=128, block_elems=1 << 19, n_cores=None):
    """pred, true: float arrays of identical shape (e.g. NCHW), f32 or bf16.
    Returns the scalar mean QFocal loss (reduction='mean')."""
    assert pred.shape == true.shape
    total = math.prod(pred.shape)
    assert total > 0

    cdiv = lambda a, b: -(-a // b)
    gen = _tpu_generation()
    if n_cores is None:
        n_cores = 2 if gen >= 7 else 1          # 2 TCs/chip only on v7x
    approx_recip = gen >= 7                     # compute-bound regime only

    # Free bitcast view for contiguous inputs.
    p_flat = pred.reshape(-1)
    t_flat = true.reshape(-1)

    rem = total % lane
    if rem:
        # TODO(synk): this concatenate re-materializes the inputs through HBM;
        # it is only hit when numel isn't a multiple of 128 (rare for yolov5
        # tensors).  (pred=0, true=0.5) padding contributes exactly zero loss.
        pad = lane - rem
        p_flat = jnp.concatenate([p_flat, jnp.zeros((pad,), p_flat.dtype)])
        t_flat = jnp.concatenate([t_flat, jnp.full((pad,), 0.5, t_flat.dtype)])
    rows = p_flat.shape[0] // lane
    p2 = p_flat.reshape(rows, lane)
    t2 = t_flat.reshape(rows, lane)

    # Minimum sublane multiple for the (packed) input dtypes.
    sub = max(8,
              32 // jnp.dtype(p2.dtype).itemsize,
              32 // jnp.dtype(t2.dtype).itemsize)
    max_rb = max(sub, (block_elems // lane) // sub * sub)
    # Either the full row extent (always a legal block) or a sub-aligned tile.
    row_block = rows if rows <= max_rb else max_rb

    blocks_total = cdiv(rows, row_block)
    n_full = rows // row_block                   # blocks that need no masking
    n_cores = max(1, min(n_cores, blocks_total))
    blocks_per_core = cdiv(blocks_total, n_cores)
    last_block = blocks_total - 1

    def in_map(c, i):
        # Clamp so a fully out-of-range block (odd block count on 2 cores)
        # re-reads the last valid tile instead of issuing an OOB DMA; its
        # contribution is zeroed by the in-kernel row mask.
        return (jnp.minimum(c * blocks_per_core + i, last_block), 0)

    grid_elems = n_cores * blocks_per_core * row_block * lane
    in_bytes = (p2.size * p2.dtype.itemsize + t2.size * t2.dtype.itemsize)
    cost = pl.CostEstimate(
        flops=18 * grid_elems,
        transcendentals=5 * grid_elems,
        bytes_accessed=in_bytes + n_cores * 8 * 128 * 4,
    )

    kernel = functools.partial(
        _qfocal_kernel,
        rows=rows, row_block=row_block, blocks_per_core=blocks_per_core,
        n_full=n_full, inv_total=1.0 / total, gamma=gamma, alpha=alpha,
        approx_recip=approx_recip)

    dim_sem = (pltpu.CORE_PARALLEL if n_cores > 1 else pltpu.ARBITRARY,
               pltpu.ARBITRARY)

    out = pl.pallas_call(
        kernel,
        out_shape=jax.ShapeDtypeStruct((n_cores, 8, 128), jnp.float32),
        grid_spec=pltpu.PrefetchScalarGridSpec(
            num_scalar_prefetch=0,
            grid=(n_cores, blocks_per_core),
            in_specs=[
                pl.BlockSpec((row_block, lane), in_map),
                pl.BlockSpec((row_block, lane), in_map),
            ],
            out_specs=pl.BlockSpec((1, 8, 128), lambda c, i: (c, 0, 0)),
            scratch_shapes=[pltpu.VMEM((row_block, lane), jnp.float32)],
        ),
        compiler_params=pltpu.CompilerParams(dimension_semantics=dim_sem),
        cost_estimate=cost,
    )(p2, t2)

    # One partial mean per core (each already divided by total); sum them.
    return jnp.sum(out[:, 0, 0])


def qfocal_loss_ref(pred, true, gamma=GAMMA, alpha=ALPHA):
    x = pred.astype(jnp.float32)
    y = true.astype(jnp.float32)
    bce = jnp.maximum(x, 0.0) - x * y + jnp.log1p(jnp.exp(-jnp.abs(x)))
    p = jax.nn.sigmoid(x)
    af = y * alpha + (1.0 - y) * (1.0 - alpha)
    mf = jnp.abs(y - p) ** gamma
    return jnp.mean(bce * af * mf)


if __name__ == "__main__":
    key = jax.random.PRNGKey(0)
    k1, k2 = jax.random.split(key)

    # NCHW, matching the PyTorch convention.
    B, C, H, W = 2, 4, 16, 16
    pred = jax.random.normal(k1, (B, C, H, W), dtype=jnp.float32) * 2.0
    # targets in [0, 1] (quality/IoU-style soft labels, as in yolov5)
    true = jax.random.uniform(k2, (B, C, H, W), dtype=jnp.float32)

    out = jax.block_until_ready(qfocal_loss(pred, true))
    ref = qfocal_loss_ref(pred, true)
    assert jnp.allclose(out, ref, rtol=2e-3, atol=1e-6), (out, ref)

    # Ragged row count -> exercises the in-kernel mask path (no padding copy).
    p_r = jax.random.normal(k1, (3, 5, 16, 16), dtype=jnp.float32) * 2.0
    t_r = jax.random.uniform(k2, (3, 5, 16, 16), dtype=jnp.float32)
    out_r = jax.block_until_ready(qfocal_loss(p_r, t_r, block_elems=1024))
    ref_r = qfocal_loss_ref(p_r, t_r)
    assert jnp.allclose(out_r, ref_r, rtol=2e-3, atol=1e-6), (out_r, ref_r)

    # bf16 passthrough (kernel upcasts internally; halves HBM bytes).
    pred_bf = pred.astype(jnp.bfloat16)
    true_bf = true.astype(jnp.bfloat16)
    out_bf = jax.block_until_ready(qfocal_loss(pred_bf, true_bf))
    ref_bf = qfocal_loss_ref(pred_bf, true_bf)
    assert jnp.allclose(out_bf, ref_bf, rtol=2e-3, atol=1e-6), (out_bf, ref_bf)

    # Numel not a multiple of 128 -> padded fallback path.
    p_o = jax.random.normal(k1, (2, 3, 5, 7), dtype=jnp.float32)
    t_o = jax.random.uniform(k2, (2, 3, 5, 7), dtype=jnp.float32)
    out_o = jax.block_until_ready(qfocal_loss(p_o, t_o))
    ref_o = qfocal_loss_ref(p_o, t_o)
    assert jnp.allclose(out_o, ref_o, rtol=2e-3, atol=1e-6), (out_o, ref_o)

    print("KERNEL_OK")
</pallas_src>

<mosaic_0001>
module attributes {stable_mosaic.version = 11 : i64} {
  func.func @_qfocal_kernel(%arg0: i32, %arg1: i32, %arg2: memref<16x128xf32, #tpu.memory_space<vmem>>, %arg3: memref<16x128xf32, #tpu.memory_space<vmem>>, %arg4: memref<1x8x128xf32, #tpu.memory_space<vmem>>, %arg5: memref<16x128xf32, #tpu.memory_space<vmem>>) attributes {dimension_semantics = [#tpu.dimension_semantics<arbitrary>, #tpu.dimension_semantics<arbitrary>], iteration_bounds = array<i64: 1, 1>, scalar_prefetch = 0 : i64, scratch_operands = 1 : i64, tpu.core_type = #tpu.core_type<tc>, window_params = [{transform_indices = @transform_0, window_bounds = array<i64: 16, 128>}, {transform_indices = @transform_1, window_bounds = array<i64: 16, 128>}, {transform_indices = @transform_2, window_bounds = array<i64: 1, 8, 128>}]} {
    %c1_i32 = arith.constant 1 : i32
    %0 = arith.muli %arg0, %c1_i32 : i32
    %1 = arith.addi %0, %arg1 : i32
    %c0_i32 = arith.constant 0 : i32
    %2 = arith.cmpi eq, %arg1, %c0_i32 : i32
    %3 = arith.extui %2 : i1 to i32
    %c0_i32_0 = arith.constant 0 : i32
    %4 = arith.cmpi ne, %3, %c0_i32_0 : i32
    scf.if %4 {
      %cst_16 = arith.constant 0.000000e+00 : f32
      %44 = vector.broadcast %cst_16 : f32 to vector<16x128xf32>
      %c0_17 = arith.constant 0 : index
      %c0_18 = arith.constant 0 : index
      %45 = vector.load %arg5[%c0_17, %c0_18] : memref<16x128xf32, #tpu.memory_space<vmem>>, vector<16x128xf32>
      tpu.vector_store %arg5[%c0_17, %c0_18], %44 {strides = array<i32>} : memref<16x128xf32, #tpu.memory_space<vmem>>, vector<16x128xf32>,
    } else {
    }
    %c0 = arith.constant 0 : index
    %c0_1 = arith.constant 0 : index
    %5 = vector.load %arg2[%c0, %c0_1] : memref<16x128xf32, #tpu.memory_space<vmem>>, vector<16x128xf32>
    %c0_2 = arith.constant 0 : index
    %c0_3 = arith.constant 0 : index
    %6 = vector.load %arg3[%c0_2, %c0_3] : memref<16x128xf32, #tpu.memory_space<vmem>>, vector<16x128xf32>
    %7 = math.absf %5 : vector<16x128xf32>
    %cst = arith.constant 0.000000e+00 : f32
    %8 = vector.broadcast %cst : f32 to vector<16x128xf32>
    %9 = arith.subf %8, %7 : vector<16x128xf32>
    %10 = math.exp %9 : vector<16x128xf32>
    %cst_4 = arith.constant 0.000000e+00 : f32
    %11 = vector.broadcast %cst_4 : f32 to vector<16x128xf32>
    %12 = arith.maximumf %5, %11 : vector<16x128xf32>
    %13 = arith.mulf %5, %6 : vector<16x128xf32>
    %14 = arith.subf %12, %13 : vector<16x128xf32>
    %15 = math.log1p %10 : vector<16x128xf32>
    %16 = arith.addf %14, %15 : vector<16x128xf32>
    %cst_5 = arith.constant 1.000000e+00 : f32
    %17 = vector.broadcast %cst_5 : f32 to vector<16x128xf32>
    %18 = arith.addf %17, %10 : vector<16x128xf32>
    %cst_6 = arith.constant 1.000000e+00 : f32
    %19 = vector.broadcast %cst_6 : f32 to vector<16x128xf32>
    %20 = arith.divf %19, %18 : vector<16x128xf32>
    %cst_7 = arith.constant 0.000000e+00 : f32
    %21 = vector.broadcast %cst_7 : f32 to vector<16x128xf32>
    %22 = arith.cmpf oge, %5, %21 : vector<16x128xf32>
    %23 = arith.mulf %10, %20 : vector<16x128xf32>
    %24 = arith.select %22, %20, %23 : vector<16x128xi1>, vector<16x128xf32>
    %cst_8 = arith.constant -5.000000e-01 : f32
    %25 = vector.broadcast %cst_8 : f32 to vector<16x128xf32>
    %26 = arith.mulf %6, %25 : vector<16x128xf32>
    %cst_9 = arith.constant 7.500000e-01 : f32
    %27 = vector.broadcast %cst_9 : f32 to vector<16x128xf32>
    %28 = arith.addf %27, %26 : vector<16x128xf32>
    %29 = arith.subf %6, %24 : vector<16x128xf32>
    %30 = math.absf %29 : vector<16x128xf32>
    %31 = math.sqrt %30 : vector<16x128xf32>
    %32 = arith.mulf %30, %31 : vector<16x128xf32>
    %33 = arith.mulf %16, %28 : vector<16x128xf32>
    %34 = arith.mulf %33, %32 : vector<16x128xf32>
    %c1_i32_10 = arith.constant 1 : i32
    %35 = arith.cmpi slt, %1, %c1_i32_10 : i32
    %36 = arith.extui %35 : i1 to i32
    %c0_i32_11 = arith.constant 0 : i32
    %37 = arith.cmpi ne, %36, %c0_i32_11 : i32
    scf.if %37 {
      %c0_16 = arith.constant 0 : index
      %c0_17 = arith.constant 0 : index
      %44 = vector.load %arg5[%c0_16, %c0_17] : memref<16x128xf32, #tpu.memory_space<vmem>>, vector<16x128xf32>
      %45 = arith.addf %44, %34 : vector<16x128xf32>
      %c0_18 = arith.constant 0 : index
      %c0_19 = arith.constant 0 : index
      %46 = vector.load %arg5[%c0_18, %c0_19] : memref<16x128xf32, #tpu.memory_space<vmem>>, vector<16x128xf32>
      tpu.vector_store %arg5[%c0_18, %c0_19], %45 {strides = array<i32>} : memref<16x128xf32, #tpu.memory_space<vmem>>, vector<16x128xf32>,
    } else {
    }
    %c1_i32_12 = arith.constant 1 : i32
    %38 = arith.cmpi sge, %1, %c1_i32_12 : i32
    %39 = arith.extui %38 : i1 to i32
    %c0_i32_13 = arith.constant 0 : i32
    %40 = arith.cmpi ne, %39, %c0_i32_13 : i32
    scf.if %40 {
      %c16_i32 = arith.constant 16 : i32
      %44 = arith.muli %1, %c16_i32 : i32
      %45 = tpu.iota {dimensions = array<i32: 0>} : vector<16x128xi32>
      %46 = vector.broadcast %44 : i32 to vector<16x128xi32>
      %47 = arith.addi %46, %45 : vector<16x128xi32>
      %c0_16 = arith.constant 0 : index
      %c0_17 = arith.constant 0 : index
      %48 = vector.load %arg5[%c0_16, %c0_17] : memref<16x128xf32, #tpu.memory_space<vmem>>, vector<16x128xf32>
      %c16_i32_18 = arith.constant 16 : i32
      %49 = vector.broadcast %c16_i32_18 : i32 to vector<16x128xi32>
      %50 = arith.cmpi slt, %47, %49 : vector<16x128xi32>
      %cst_19 = arith.constant 0.000000e+00 : f32
      %51 = vector.broadcast %cst_19 : f32 to vector<16x128xf32>
      %52 = arith.select %50, %34, %51 : vector<16x128xi1>, vector<16x128xf32>
      %53 = arith.addf %48, %52 : vector<16x128xf32>
      %c0_20 = arith.constant 0 : index
      %c0_21 = arith.constant 0 : index
      %54 = vector.load %arg5[%c0_20, %c0_21] : memref<16x128xf32, #tpu.memory_space<vmem>>, vector<16x128xf32>
      tpu.vector_store %arg5[%c0_20, %c0_21], %53 {strides = array<i32>} : memref<16x128xf32, #tpu.memory_space<vmem>>, vector<16x128xf32>,
    } else {
    }
    %c0_i32_14 = arith.constant 0 : i32
    %41 = arith.cmpi eq, %arg1, %c0_i32_14 : i32
    %42 = arith.extui %41 : i1 to i32
    %c0_i32_15 = arith.constant 0 : i32
    %43 = arith.cmpi ne, %42, %c0_i32_15 : i32
    scf.if %43 {
      %c0_16 = arith.constant 0 : index
      %c0_17 = arith.constant 0 : index
      %44 = vector.load %arg5[%c0_16, %c0_17] : memref<16x128xf32, #tpu.memory_space<vmem>>, vector<16x128xf32>
      %45 = vector.shape_cast %44 : vector<16x128xf32> to vector<1x16x128xf32>
      %cst_18 = arith.constant dense<0.000000e+00> : vector<1xf32>
      %46 = vector.multi_reduction <add>, %45, %cst_18 [1, 2] : vector<1x16x128xf32> to vector<1xf32>
      %47 = vector.shape_cast %46 : vector<1xf32> to vector<1x1x1xf32>
      %48 = vector.extract %47[0, 0, 0] : f32 from vector<1x1x1xf32>
      %cst_19 = arith.constant 4.8828125E-4 : f32
      %49 = arith.mulf %48, %cst_19 : f32
      %50 = vector.broadcast %49 : f32 to vector<1x8x128xf32>
      %c0_20 = arith.constant 0 : index
      %c0_21 = arith.constant 0 : index
      %c0_22 = arith.constant 0 : index
      %51 = vector.load %arg4[%c0_20, %c0_21, %c0_22] : memref<1x8x128xf32, #tpu.memory_space<vmem>>, vector<1x8x128xf32>
      tpu.vector_store %arg4[%c0_20, %c0_21, %c0_22], %50 {strides = array<i32>} : memref<1x8x128xf32, #tpu.memory_space<vmem>>, vector<1x8x128xf32>,
    } else {
    }
    return
  }
  func.func @transform_0(%arg0: i32, %arg1: i32) -> (i32, i32) {
    %c1_i32 = arith.constant 1 : i32
    %0 = arith.muli %arg0, %c1_i32 : i32
    %1 = arith.addi %0, %arg1 : i32
    %c0_i32 = arith.constant 0 : i32
    %2 = arith.minsi %1, %c0_i32 : i32
    %c0_i32_0 = arith.constant 0 : i32
    %c0_i32_1 = arith.constant 0 : i32
    return %2, %c0_i32_0 : i32, i32
  }
  func.func @transform_1(%arg0: i32, %arg1: i32) -> (i32, i32) {
    %c1_i32 = arith.constant 1 : i32
    %0 = arith.muli %arg0, %c1_i32 : i32
    %1 = arith.addi %0, %arg1 : i32
    %c0_i32 = arith.constant 0 : i32
    %2 = arith.minsi %1, %c0_i32 : i32
    %c0_i32_0 = arith.constant 0 : i32
    %c0_i32_1 = arith.constant 0 : i32
    return %2, %c0_i32_0 : i32, i32
  }
  func.func @transform_2(%arg0: i32, %arg1: i32) -> (i32, i32, i32) {
    %c0_i32 = arith.constant 0 : i32
    %c0_i32_0 = arith.constant 0 : i32
    %c0_i32_1 = arith.constant 0 : i32
    return %arg0, %c0_i32, %c0_i32_0 : i32, i32, i32
  }
}

</mosaic_0001>

<llo_original>
// kernel: tpu_custom_call.1
$region0: #{tpu_custom_call.1}
  #allocation0 [shape = 'u32[]', space=smem, size = 0x4, offset = 0x4, fixed_abs, tag = 'smem constant byte address 0x4 - core index']
  #allocation1 [shape = 'u32[144,128]{1,0:T(1,128)}', space=vmem, size = 0x12000, scoped, tag = 'internal scratch']
  #allocation2 [shape = 'f32[16,128]{1,0:T(8,128)}', space=vmem, size = 0x2000, scoped, tag = 'scratch operand']
  %s0 = inlined_call_operand.hbm [shape: f32[16,128], index: 0, kind: input, shape index: {}]
  %s1 = inlined_call_operand.hbm [shape: f32[16,128], index: 1, kind: input, shape index: {}]
  %s2 = inlined_call_operand.hbm [shape: f32[1,8,128], index: 2, kind: output, shape index: {}]
  %s3 = sld [smem:[#allocation0]]
  $region42: #{tpu_custom_call.1} parent=0
    _
  %s5 = ssub.s32 1, %s3
  %s6 = scalar_select 0, %s5, %s3
  $region1: #{tpu_custom_call.1} parent=0
    #allocation3 [shape = 'u8[8192]{0}', space=vmem, size = 0x2000, scoped, tag = 'input window, operand 0, single buffered']
    #allocation4 [shape = 's32[1]{0}', space=sflag, size = 0x4, scoped, tag = 'scoped memory for tpu_custom_call.1']
    #allocation5 [shape = 's32[1]{0}', space=sflag, size = 0x4, scoped, tag = 'scoped memory for tpu_custom_call.1']
    #allocation6 [shape = 'u8[8192]{0}', space=vmem, size = 0x2000, scoped, tag = 'input window, operand 1, single buffered']
    #allocation7 [shape = 's32[1]{0}', space=sflag, size = 0x4, scoped, tag = 'scoped memory for tpu_custom_call.1']
    #allocation8 [shape = 'u8[4096]{0}', space=vmem, size = 0x1000, scoped, tag = 'output window, operand 0, single buffered']
    %7 = vsyncpa [#allocation4], 0
    %8 = vsyncpa [#allocation7], 0
    %9 = vsyncpa [#allocation5], 0
    // Predicated region
    $region2: #{tpu_custom_call.1} parent=1 // pred_check
      _
    $region3: #{tpu_custom_call.1} parent=1 // pred_check_branch
      %11 = sbr.rel (0) target = $region5
    $region4: #{tpu_custom_call.1} parent=1 // pred_region
      %s12 = sadd.s32 0, 0
      %p13 = scmp.lt.s32.totalorder %s12, 0
      %s14 = scalar_select %p13, %s12, 0
      %s15 = smul.u32 2, %s14
      %s17 = ssub.s32 256, 256
      %18 = vsyncadd [#allocation4], %s17
      %s19 = smul.addr %s15, 128
      %s20 = scalar_lea.hbm %s0, %s19
      %s21 = sshll.u32 [#allocation3], 4
      %s22 = int_to_ptr.vmem [resolvable:$true] %s21
      %27 = dma.hbm_to_vmem [thread:$0]  %s20, 256, %s22, [#allocation4], 128, 128, 8
    $region5: #{tpu_custom_call.1} parent=1 // pred_fallthru
      _
    // Predicated region
    $region6: #{tpu_custom_call.1} parent=1 // pred_check
      _
    $region7: #{tpu_custom_call.1} parent=1 // pred_check_branch
      %29 = sbr.rel (0) target = $region9
    $region8: #{tpu_custom_call.1} parent=1 // pred_region
      %s30 = sadd.s32 0, 0
      %p31 = scmp.lt.s32.totalorder %s30, 0
      %s32 = scalar_select %p31, %s30, 0
      %s33 = smul.u32 2, %s32
      %s35 = ssub.s32 256, 256
      %36 = vsyncadd [#allocation7], %s35
      %s37 = smul.addr %s33, 128
      %s38 = scalar_lea.hbm %s1, %s37
      %s39 = sshll.u32 [#allocation6], 4
      %s40 = int_to_ptr.vmem [resolvable:$true] %s39
      %45 = dma.hbm_to_vmem [thread:$0]  %s38, 256, %s40, [#allocation7], 128, 128, 8
    $region9: #{tpu_custom_call.1} parent=1 // pred_fallthru
      _
    // Predicated region
    $region10: #{tpu_custom_call.1} parent=1 // pred_check
      _
    $region11: #{tpu_custom_call.1} parent=1 // pred_check_branch
      %47 = sbr.rel (0) target = $region13
    $region12: #{tpu_custom_call.1} parent=1 // pred_region
      %48 = dma.done [#allocation4], 256
    $region13: #{tpu_custom_call.1} parent=1 // pred_fallthru
      _
    // Predicated region
    $region14: #{tpu_custom_call.1} parent=1 // pred_check
      _
    $region15: #{tpu_custom_call.1} parent=1 // pred_check_branch
      %50 = sbr.rel (0) target = $region17
    $region16: #{tpu_custom_call.1} parent=1 // pred_region
      %51 = dma.done [#allocation7], 256
    $region17: #{tpu_custom_call.1} parent=1 // pred_fallthru
      _
    %s52 = sadd.s32 0, 0
    %p53 = scmp.lt.s32.totalorder %s52, 0
    %s54 = scalar_select %p53, %s52, 0
    %s55 = smul.u32 2, %s54
    %s56 = sadd.s32 0, 0
    %p57 = scmp.lt.s32.totalorder %s56, 0
    %s58 = scalar_select %p57, %s56, 0
    %s59 = smul.u32 2, %s58
    %s60 = sadd.s32 0, 0
    %p61 = scmp.eq.s32.totalorder 0, 0
    // Predicated region
    $region18: #{tpu_custom_call.1} parent=1 // pred_check
      %p62 = pneg %p61
    $region19: #{tpu_custom_call.1} parent=1 // pred_check_branch
      %64 = sbr.rel (%p62) target = $region21
    $region20: #{tpu_custom_call.1} parent=1 // pred_region
      %65 = vst [vmem:[#allocation2] sm:$0xff] 0.0
      %66 = vst [vmem:[#allocation2 + $0x8] sm:$0xff] 0.0
    $region21: #{tpu_custom_call.1} parent=1 // pred_fallthru
      _
    %v67 = vld [vmem:[#allocation3] sm:$0xff]
    %v68 = vld [vmem:[#allocation3 + $0x8] sm:$0xff]
    %v69 = vld [vmem:[#allocation6] sm:$0xff]
    %v70 = vld [vmem:[#allocation6 + $0x8] sm:$0xff]
    %v71 = vand.u32 2147483647, %v67
    %v72 = vand.u32 2147483647, %v68
    %v73 = vsub.f32 0.0, %v71
    %v74 = vsub.f32 0.0, %v72
    %v75 = vmul.f32 %v73, 1.442695
    %v76 = vpow.pop %v75
    %v77 = vmul.f32 %v74, 1.442695
    %v78 = vpow.pop %v77
    %v79 = vmax.f32 %v67, 0.0
    %v80 = vmax.f32 %v68, 0.0
    %v81 = vmul.f32 %v67, %v69
    %v82 = vmul.f32 %v68, %v70
    %v83 = vsub.f32 %v79, %v81
    %v84 = vsub.f32 %v80, %v82
    %v85 = vadd.f32 %v76, 1.0
    %v86 = vlog2.pop %v85
    %v87 = vmul.f32 %v86, 0.6931472
    %v88 = vmul.f32 -0.5, %v76
    %v89 = vadd.f32 %v88, 1.0
    %v90 = vmul.f32 %v89, %v76
    %v91 = vand.u32 2147483647, %v76
    %vm92 = vcmp.lt.f32.partialorder %v91, 0.0004427343
    %v93 = vsel %vm92, %v90, %v87
    %v94 = vadd.f32 %v78, 1.0
    %v95 = vlog2.pop %v94
    %v96 = vmul.f32 %v95, 0.6931472
    %v97 = vmul.f32 -0.5, %v78
    %v98 = vadd.f32 %v97, 1.0
    %v99 = vmul.f32 %v98, %v78
    %v100 = vand.u32 2147483647, %v78
    %vm101 = vcmp.lt.f32.partialorder %v100, 0.0004427343
    %v102 = vsel %vm101, %v99, %v96
    %v103 = vadd.f32 %v83, %v93
    %v104 = vadd.f32 %v84, %v102
    %v105 = vadd.f32 %v76, 1.0
    %v106 = vadd.f32 %v78, 1.0
    %v107 = vrcp.pop %v105
    %v108 = vmul.f32 1.0, %v107
    %v109 = vrcp.pop %v106
    %v110 = vmul.f32 1.0, %v109
    %vm111 = vcmp.ge.f32.partialorder %v67, 0.0
    %vm112 = vcmp.ge.f32.partialorder %v68, 0.0
    %v113 = vmul.f32 %v76, %v108
    %v114 = vmul.f32 %v78, %v110
    %v115 = vsel %vm111, %v108, %v113
    %v116 = vsel %vm112, %v110, %v114
    %v117 = vmul.f32 %v69, -0.5
    %v118 = vmul.f32 %v70, -0.5
    %v119 = vadd.f32 %v117, 0.75
    %v120 = vadd.f32 %v118, 0.75
    %v121 = vsub.f32 %v69, %v115
    %v122 = vsub.f32 %v70, %v116
    %v123 = vand.u32 2147483647, %v121
    %v124 = vand.u32 2147483647, %v122
    %v125 = vrsqrt.pop %v123
    %v126 = vmul.f32 %v123, %v125
    %vm127 = vcmp.eq.f32.partialorder %v123, inf
    %v128 = vsel %vm127, %v123, %v126
    %vm129 = vcmp.eq.f32.partialorder %v123, 0.0
    %v130 = vand.u32 %v123, 2147483648
    %v131 = vsel %vm129, %v130, %v128
    %v132 = vrsqrt.pop %v124
    %v133 = vmul.f32 %v124, %v132
    %vm134 = vcmp.eq.f32.partialorder %v124, inf
    %v135 = vsel %vm134, %v124, %v133
    %vm136 = vcmp.eq.f32.partialorder %v124, 0.0
    %v137 = vand.u32 %v124, 2147483648
    %v138 = vsel %vm136, %v137, %v135
    %v139 = vmul.f32 %v123, %v131
    %v140 = vmul.f32 %v124, %v138
    %v141 = vmul.f32 %v103, %v119
    %v142 = vmul.f32 %v104, %v120
    %v143 = vmul.f32 %v141, %v139
    %v144 = vmul.f32 %v142, %v140
    %p145 = scmp.lt.s32.totalorder %s60, 1
    // Predicated region
    $region22: #{tpu_custom_call.1} parent=1 // pred_check
      %p146 = pneg %p145
    $region23: #{tpu_custom_call.1} parent=1 // pred_check_branch
      %148 = sbr.rel (%p146) target = $region25
    $region24: #{tpu_custom_call.1} parent=1 // pred_region
      %v149 = vld [vmem:[#allocation2] sm:$0xff]
      %v150 = vld [vmem:[#allocation2 + $0x8] sm:$0xff]
      %v151 = vadd.f32 %v149, %v143
      %v152 = vadd.f32 %v150, %v144
      %153 = vst [vmem:[#allocation2] sm:$0xff] %v151
      %154 = vst [vmem:[#allocation2 + $0x8] sm:$0xff] %v152
    $region25: #{tpu_custom_call.1} parent=1 // pred_fallthru
      _
    %p155 = scmp.ge.s32.totalorder %s60, 1
    // Predicated region
    $region26: #{tpu_custom_call.1} parent=1 // pred_check
      %p156 = pneg %p155
    $region27: #{tpu_custom_call.1} parent=1 // pred_check_branch
      %158 = sbr.rel (%p156) target = $region29
    $region28: #{tpu_custom_call.1} parent=1 // pred_region
      %s159 = smul.u32 %s60, 16
      %v160 = vlaneseq
      %v161 = vshrl.u32 %v160, 7
      %v162 = vadd.s32 %v161, 8
      %v163 = vstv %s159
      %v164 = vadd.s32 %v163, %v161
      %v165 = vadd.s32 %v163, %v162
      %v166 = vld [vmem:[#allocation2] sm:$0xff]
      %v167 = vld [vmem:[#allocation2 + $0x8] sm:$0xff]
      %vm168 = vcmp.lt.s32.totalorder %v164, 16
      %vm169 = vcmp.lt.s32.totalorder %v165, 16
      %v170 = vsel %vm168, %v143, 0.0
      %v171 = vsel %vm169, %v144, 0.0
      %v172 = vadd.f32 %v166, %v170
      %v173 = vadd.f32 %v167, %v171
      %174 = vst [vmem:[#allocation2] sm:$0xff] %v172
      %175 = vst [vmem:[#allocation2 + $0x8] sm:$0xff] %v173
    $region29: #{tpu_custom_call.1} parent=1 // pred_fallthru
      _
    // Predicated region
    $region30: #{tpu_custom_call.1} parent=1 // pred_check
      %p176 = pneg %p61
    $region31: #{tpu_custom_call.1} parent=1 // pred_check_branch
      %178 = sbr.rel (%p176) target = $region33
    $region32: #{tpu_custom_call.1} parent=1 // pred_region
      %v179 = vld [vmem:[#allocation2] sm:$0xff]
      %v180 = vld [vmem:[#allocation2 + $0x8] sm:$0xff]
      %v181 = vadd.f32 %v179, %v180
      %182 = vadd.xlane.f32.xlu0 %v181
      %v183 = vpop.xlane.xlu0 %182
      %v184 = vrot.slane %v183, 4
      %v185 = vadd.f32 %v183, %v184
      %v186 = vrot.slane %v185, 2
      %v187 = vadd.f32 %v185, %v186
      %v188 = vrot.slane %v187, 1
      %v189 = vadd.f32 %v187, %v188
      %s190 = vtos %v189
      %s191 = smul.f32 %s190, 0.00048828125
      %v192 = vstv %s191
      %193 = vst [vmem:[#allocation8] sm:$0xff] %v192
    $region33: #{tpu_custom_call.1} parent=1 // pred_fallthru
      _
    // Predicated region
    $region34: #{tpu_custom_call.1} parent=1 // pred_check
      _
    $region35: #{tpu_custom_call.1} parent=1 // pred_check_branch
      %195 = sbr.rel (0) target = $region37
    $region36: #{tpu_custom_call.1} parent=1 // pred_region
      %s197 = ssub.s32 128, 128
      %198 = vsyncadd [#allocation5], %s197
      %s200 = sshll.u32 [#allocation8], 4
      %s201 = int_to_ptr.vmem [resolvable:$true] %s200
      %203 = dma.vmem_to_hbm [thread:$0]  %s201, 128, %s2, [#allocation5]
    $region37: #{tpu_custom_call.1} parent=1 // pred_fallthru
      _
    // Predicated region
    $region38: #{tpu_custom_call.1} parent=1 // pred_check
      _
    $region39: #{tpu_custom_call.1} parent=1 // pred_check_branch
      %205 = sbr.rel (0) target = $region41
    $region40: #{tpu_custom_call.1} parent=1 // pred_region
      %206 = dma.done [#allocation5], 128
    $region41: #{tpu_custom_call.1} parent=1 // pred_fallthru
      _
    %207 = vsyncpa [#allocation4], 1
    %208 = vsyncpa [#allocation7], 1
    %209 = vsyncpa [#allocation5], 1

</llo_original>
